<compile_context>
chip_gen: v7x
topology: tpu7x:2x2x1
jax: 0.10.0
libtpu: 0.0.40
codegen_flags: <defaults>
</compile_context>

<pallas_src>
import jax
import jax.numpy as jnp
from jax.experimental import pallas as pl
from jax.experimental.pallas import tpu as pltpu


def mlp_kernel(x_ref, w1_ref, b1_ref, w2_ref, b2_ref, w3_ref, b3_ref,
               w4_ref, b4_ref, o_ref):
    # x_ref: (1, tm) f32 -> hidden (64, tm) -> ... -> out (1, tm) f32.
    x = x_ref[...]                                                  # (1, tm)

    # Layer 1: (64,1) weight column * (1,tm) batch row — pure VPU broadcast
    # mul+add.
    h = jnp.tanh(w1_ref[...] * x + b1_ref[...])                     # (64, tm) f32

    # Layers 2/3: 64x64 MXU contractions, bf16 operands, f32 accumulate.
    h = jnp.tanh(
        jnp.dot(w2_ref[...], h.astype(jnp.bfloat16),
                preferred_element_type=jnp.float32) + b2_ref[...])
    h = jnp.tanh(
        jnp.dot(w3_ref[...], h.astype(jnp.bfloat16),
                preferred_element_type=jnp.float32) + b3_ref[...])

    # Layer 4: (1,64) @ (64,tm) -> lane-dense (1,tm) output row.
    y = jnp.dot(w4_ref[...], h.astype(jnp.bfloat16),
                preferred_element_type=jnp.float32) + b4_ref[...]
    o_ref[...] = y.astype(o_ref.dtype)


def _ceil_to(x, m):
    return ((x + m - 1) // m) * m


def mlp_forward(x, params, *, tm=None):
    """x: (N, 1) float32. params: w1..w4 as (fan_in, fan_out), b1..b4 as (1, H)."""
    N, d_in = x.shape
    assert d_in == 1

    # Tile selection: one step for small batches (per-step overhead dominates);
    # for large batches cap the lane width so the (64, tm) f32 intermediates
    # stay ~512 KiB and every TensorCore gets >= 2 pipelined steps.
    if tm is None:
        tm = _ceil_to(N, 128) if N <= 4096 else 2048
    assert tm % 128 == 0, "tile lane width must be a multiple of 128"
    n_pad = _ceil_to(N, tm)

    # Batch on lanes; pad the lane axis up to a multiple of tm.
    x_t = jnp.pad(x.reshape(1, N), ((0, 0), (0, n_pad - N)))

    # Transposed weights (hidden on sublanes).  MXU operands in bf16; the
    # layer-1 broadcast weight and all biases stay f32.
    w1t, b1t = params["w1"].T, params["b1"].T                        # (64,1) f32
    w2t, b2t = params["w2"].T.astype(jnp.bfloat16), params["b2"].T   # (64,64) bf16
    w3t, b3t = params["w3"].T.astype(jnp.bfloat16), params["b3"].T   # (64,64) bf16
    w4t, b4t = params["w4"].T.astype(jnp.bfloat16), params["b4"].T   # (1,64) bf16

    consts = (w1t, b1t, w2t, b2t, w3t, b3t, w4t, b4t)

    def call(single_buffer_weights):
        def full(arr):
            if single_buffer_weights:
                # Grid-invariant blocks: no point double-buffering them.
                return pl.BlockSpec(arr.shape, lambda i: (0, 0),
                                    pipeline_mode=pl.Buffered(1))
            return pl.BlockSpec(arr.shape, lambda i: (0, 0))

        return pl.pallas_call(
            mlp_kernel,
            out_shape=jax.ShapeDtypeStruct((1, n_pad), jnp.float32),
            grid_spec=pltpu.PrefetchScalarGridSpec(
                num_scalar_prefetch=0,
                grid=(n_pad // tm,),
                in_specs=[pl.BlockSpec((1, tm), lambda i: (0, i))]
                         + [full(a) for a in consts],
                out_specs=pl.BlockSpec((1, tm), lambda i: (0, i)),
            ),
            compiler_params=pltpu.CompilerParams(
                dimension_semantics=("parallel",),
                vmem_limit_bytes=32 * 1024 * 1024),
        )(x_t, *consts)

    try:
        y_t = call(single_buffer_weights=True)
    except Exception:
        # pipeline_mode / Buffered(1) not supported by this Pallas build:
        # fall back to default double-buffering (identical results).
        y_t = call(single_buffer_weights=False)

    return y_t[:, :N].reshape(N, 1)


def init_params(key):
    """Deterministic init mimicking nn.Linear's U(-1/sqrt(fan_in), 1/sqrt(fan_in))."""
    dims = [1, 64, 64, 64, 1]
    params = {}
    for idx in range(4):
        fan_in, fan_out = dims[idx], dims[idx + 1]
        key, kw, kb = jax.random.split(key, 3)
        bound = 1.0 / jnp.sqrt(jnp.float32(fan_in))
        # stored as (fan_in, fan_out) so the reference forward is x @ W + b
        params[f"w{idx + 1}"] = jax.random.uniform(
            kw, (fan_in, fan_out), jnp.float32, -bound, bound)
        params[f"b{idx + 1}"] = jax.random.uniform(
            kb, (1, fan_out), jnp.float32, -bound, bound)
    return params


def reference_forward(x, params, *, mxu_bf16=False):
    def dot(a, w):
        if mxu_bf16:
            return jnp.dot(a.astype(jnp.bfloat16), w.astype(jnp.bfloat16),
                           preferred_element_type=jnp.float32)
        return a @ w

    h = jnp.tanh(x @ params["w1"] + params["b1"])       # layer 1 is f32 in the kernel too
    h = jnp.tanh(dot(h, params["w2"]) + params["b2"])
    h = jnp.tanh(dot(h, params["w3"]) + params["b3"])
    return dot(h, params["w4"]) + params["b4"]


if __name__ == "__main__":
    key = jax.random.PRNGKey(0)
    params = init_params(key)

    # Small batch of scalar inputs, like torch.linspace(-1, 1, N).unsqueeze(1).
    N = 256
    x = jnp.linspace(-1.0, 1.0, N, dtype=jnp.float32).reshape(N, 1)

    out = jax.block_until_ready(mlp_forward(x, params))
    assert out.shape == (N, 1)

    # Tight check vs a reference that mirrors the bf16 MXU operands, plus a
    # loose sanity check vs the full-f32 reference.
    ref_bf16 = reference_forward(x, params, mxu_bf16=True)
    ref_f32 = reference_forward(x, params, mxu_bf16=False)
    assert jnp.allclose(out, ref_bf16, atol=2e-3, rtol=2e-3), "mismatch vs bf16 reference"
    assert jnp.allclose(out, ref_f32, atol=5e-2, rtol=5e-2), "mismatch vs f32 reference"

    # TODO(synk): nn.Dropout(p) only affects training mode; eval-mode forward
    # (as implemented here) matches the PyTorch module.
    print("KERNEL_OK")
</pallas_src>

<mosaic_0001>
module attributes {stable_mosaic.version = 11 : i64} {
  func.func @mlp_kernel(%arg0: i32, %arg1: memref<1x256xf32, #tpu.memory_space<vmem>>, %arg2: memref<64x1xf32, #tpu.memory_space<vmem>>, %arg3: memref<64x1xf32, #tpu.memory_space<vmem>>, %arg4: memref<64x64xbf16, #tpu.memory_space<vmem>>, %arg5: memref<64x1xf32, #tpu.memory_space<vmem>>, %arg6: memref<64x64xbf16, #tpu.memory_space<vmem>>, %arg7: memref<64x1xf32, #tpu.memory_space<vmem>>, %arg8: memref<1x64xbf16, #tpu.memory_space<vmem>>, %arg9: memref<1x1xf32, #tpu.memory_space<vmem>>, %arg10: memref<1x256xf32, #tpu.memory_space<vmem>>) attributes {dimension_semantics = [#tpu.dimension_semantics<parallel>], iteration_bounds = array<i64: 1>, scalar_prefetch = 0 : i64, scratch_operands = 0 : i64, tpu.core_type = #tpu.core_type<tc>, window_params = [{transform_indices = @transform_0, window_bounds = array<i64: 1, 256>}, {pipeline_mode = #tpu.pipeline_mode<synchronous>, transform_indices = @transform_1, window_bounds = array<i64: 64, 1>}, {pipeline_mode = #tpu.pipeline_mode<synchronous>, transform_indices = @transform_2, window_bounds = array<i64: 64, 1>}, {pipeline_mode = #tpu.pipeline_mode<synchronous>, transform_indices = @transform_3, window_bounds = array<i64: 64, 64>}, {pipeline_mode = #tpu.pipeline_mode<synchronous>, transform_indices = @transform_4, window_bounds = array<i64: 64, 1>}, {pipeline_mode = #tpu.pipeline_mode<synchronous>, transform_indices = @transform_5, window_bounds = array<i64: 64, 64>}, {pipeline_mode = #tpu.pipeline_mode<synchronous>, transform_indices = @transform_6, window_bounds = array<i64: 64, 1>}, {pipeline_mode = #tpu.pipeline_mode<synchronous>, transform_indices = @transform_7, window_bounds = array<i64: 1, 64>}, {pipeline_mode = #tpu.pipeline_mode<synchronous>, transform_indices = @transform_8, window_bounds = array<i64: 1, 1>}, {transform_indices = @transform_9, window_bounds = array<i64: 1, 256>}]} {
    %c0 = arith.constant 0 : index
    %c0_0 = arith.constant 0 : index
    %0 = vector.load %arg1[%c0, %c0_0] : memref<1x256xf32, #tpu.memory_space<vmem>>, vector<1x256xf32>
    %c0_1 = arith.constant 0 : index
    %c0_2 = arith.constant 0 : index
    %1 = vector.load %arg2[%c0_1, %c0_2] : memref<64x1xf32, #tpu.memory_space<vmem>>, vector<64x1xf32>
    %2 = vector.broadcast %1 : vector<64x1xf32> to vector<64x256xf32>
    %3 = vector.broadcast %0 : vector<1x256xf32> to vector<64x256xf32>
    %4 = arith.mulf %2, %3 : vector<64x256xf32>
    %c0_3 = arith.constant 0 : index
    %c0_4 = arith.constant 0 : index
    %5 = vector.load %arg3[%c0_3, %c0_4] : memref<64x1xf32, #tpu.memory_space<vmem>>, vector<64x1xf32>
    %6 = vector.broadcast %5 : vector<64x1xf32> to vector<64x256xf32>
    %7 = arith.addf %4, %6 : vector<64x256xf32>
    %8 = math.tanh %7 : vector<64x256xf32>
    %c0_5 = arith.constant 0 : index
    %c0_6 = arith.constant 0 : index
    %9 = vector.load %arg4[%c0_5, %c0_6] : memref<64x64xbf16, #tpu.memory_space<vmem>>, vector<64x64xbf16>
    %10 = arith.truncf %8 : vector<64x256xf32> to vector<64x256xbf16>
    %cst = arith.constant dense<0.000000e+00> : vector<64x256xf32>
    %11 = tpu.matmul %9, %10, %cst {dimension_numbers = #tpu.dot_dimension_numbers<[1], [0], [0], [1], [0, 0, 1, 1], [], []>} : vector<64x64xbf16>, vector<64x256xbf16>, vector<64x256xf32> -> vector<64x256xf32>
    %c0_7 = arith.constant 0 : index
    %c0_8 = arith.constant 0 : index
    %12 = vector.load %arg5[%c0_7, %c0_8] : memref<64x1xf32, #tpu.memory_space<vmem>>, vector<64x1xf32>
    %13 = vector.broadcast %12 : vector<64x1xf32> to vector<64x256xf32>
    %14 = arith.addf %11, %13 : vector<64x256xf32>
    %15 = math.tanh %14 : vector<64x256xf32>
    %c0_9 = arith.constant 0 : index
    %c0_10 = arith.constant 0 : index
    %16 = vector.load %arg6[%c0_9, %c0_10] : memref<64x64xbf16, #tpu.memory_space<vmem>>, vector<64x64xbf16>
    %17 = arith.truncf %15 : vector<64x256xf32> to vector<64x256xbf16>
    %cst_11 = arith.constant dense<0.000000e+00> : vector<64x256xf32>
    %18 = tpu.matmul %16, %17, %cst_11 {dimension_numbers = #tpu.dot_dimension_numbers<[1], [0], [0], [1], [0, 0, 1, 1], [], []>} : vector<64x64xbf16>, vector<64x256xbf16>, vector<64x256xf32> -> vector<64x256xf32>
    %c0_12 = arith.constant 0 : index
    %c0_13 = arith.constant 0 : index
    %19 = vector.load %arg7[%c0_12, %c0_13] : memref<64x1xf32, #tpu.memory_space<vmem>>, vector<64x1xf32>
    %20 = vector.broadcast %19 : vector<64x1xf32> to vector<64x256xf32>
    %21 = arith.addf %18, %20 : vector<64x256xf32>
    %22 = math.tanh %21 : vector<64x256xf32>
    %c0_14 = arith.constant 0 : index
    %c0_15 = arith.constant 0 : index
    %23 = vector.load %arg8[%c0_14, %c0_15] : memref<1x64xbf16, #tpu.memory_space<vmem>>, vector<1x64xbf16>
    %24 = arith.truncf %22 : vector<64x256xf32> to vector<64x256xbf16>
    %cst_16 = arith.constant dense<0.000000e+00> : vector<1x256xf32>
    %25 = tpu.matmul %23, %24, %cst_16 {dimension_numbers = #tpu.dot_dimension_numbers<[1], [0], [0], [1], [0, 0, 1, 1], [], []>} : vector<1x64xbf16>, vector<64x256xbf16>, vector<1x256xf32> -> vector<1x256xf32>
    %c0_17 = arith.constant 0 : index
    %c0_18 = arith.constant 0 : index
    %26 = vector.load %arg9[%c0_17, %c0_18] : memref<1x1xf32, #tpu.memory_space<vmem>>, vector<1x1xf32>
    %27 = vector.broadcast %26 : vector<1x1xf32> to vector<1x256xf32>
    %28 = arith.addf %25, %27 : vector<1x256xf32>
    %c0_19 = arith.constant 0 : index
    %c0_20 = arith.constant 0 : index
    %29 = vector.load %arg10[%c0_19, %c0_20] : memref<1x256xf32, #tpu.memory_space<vmem>>, vector<1x256xf32>
    tpu.vector_store %arg10[%c0_19, %c0_20], %28 {strides = array<i32>} : memref<1x256xf32, #tpu.memory_space<vmem>>, vector<1x256xf32>,
    return
  }
  func.func @transform_0(%arg0: i32) -> (i32, i32) {
    %c0_i32 = arith.constant 0 : i32
    %c0_i32_0 = arith.constant 0 : i32
    return %c0_i32, %arg0 : i32, i32
  }
  func.func @transform_1(%arg0: i32) -> (i32, i32) {
    %c0_i32 = arith.constant 0 : i32
    %c0_i32_0 = arith.constant 0 : i32
    %c0_i32_1 = arith.constant 0 : i32
    return %c0_i32, %c0_i32_0 : i32, i32
  }
  func.func @transform_2(%arg0: i32) -> (i32, i32) {
    %c0_i32 = arith.constant 0 : i32
    %c0_i32_0 = arith.constant 0 : i32
    %c0_i32_1 = arith.constant 0 : i32
    return %c0_i32, %c0_i32_0 : i32, i32
  }
  func.func @transform_3(%arg0: i32) -> (i32, i32) {
    %c0_i32 = arith.constant 0 : i32
    %c0_i32_0 = arith.constant 0 : i32
    %c0_i32_1 = arith.constant 0 : i32
    return %c0_i32, %c0_i32_0 : i32, i32
  }
  func.func @transform_4(%arg0: i32) -> (i32, i32) {
    %c0_i32 = arith.constant 0 : i32
    %c0_i32_0 = arith.constant 0 : i32
    %c0_i32_1 = arith.constant 0 : i32
    return %c0_i32, %c0_i32_0 : i32, i32
  }
  func.func @transform_5(%arg0: i32) -> (i32, i32) {
    %c0_i32 = arith.constant 0 : i32
    %c0_i32_0 = arith.constant 0 : i32
    %c0_i32_1 = arith.constant 0 : i32
    return %c0_i32, %c0_i32_0 : i32, i32
  }
  func.func @transform_6(%arg0: i32) -> (i32, i32) {
    %c0_i32 = arith.constant 0 : i32
    %c0_i32_0 = arith.constant 0 : i32
    %c0_i32_1 = arith.constant 0 : i32
    return %c0_i32, %c0_i32_0 : i32, i32
  }
  func.func @transform_7(%arg0: i32) -> (i32, i32) {
    %c0_i32 = arith.constant 0 : i32
    %c0_i32_0 = arith.constant 0 : i32
    %c0_i32_1 = arith.constant 0 : i32
    return %c0_i32, %c0_i32_0 : i32, i32
  }
  func.func @transform_8(%arg0: i32) -> (i32, i32) {
    %c0_i32 = arith.constant 0 : i32
    %c0_i32_0 = arith.constant 0 : i32
    %c0_i32_1 = arith.constant 0 : i32
    return %c0_i32, %c0_i32_0 : i32, i32
  }
  func.func @transform_9(%arg0: i32) -> (i32, i32) {
    %c0_i32 = arith.constant 0 : i32
    %c0_i32_0 = arith.constant 0 : i32
    return %c0_i32, %arg0 : i32, i32
  }
}

module attributes {stable_mosaic.version = 11 : i64} {
  func.func @mlp_kernel(%arg0: i32, %arg1: memref<1x256xf32, #tpu.memory_space<vmem>>, %arg2: memref<64x1xf32, #tpu.memory_space<vmem>>, %arg3: memref<64x1xf32, #tpu.memory_space<vmem>>, %arg4: memref<64x64xbf16, #tpu.memory_space<vmem>>, %arg5: memref<64x1xf32, #tpu.memory_space<vmem>>, %arg6: memref<64x64xbf16, #tpu.memory_space<vmem>>, %arg7: memref<64x1xf32, #tpu.memory_space<vmem>>, %arg8: memref<1x64xbf16, #tpu.memory_space<vmem>>, %arg9: memref<1x1xf32, #tpu.memory_space<vmem>>, %arg10: memref<1x256xf32, #tpu.memory_space<vmem>>) attributes {dimension_semantics = [#tpu.dimension_semantics<parallel>], iteration_bounds = array<i64: 1>, scalar_prefetch = 0 : i64, scratch_operands = 0 : i64, tpu.core_type = #tpu.core_type<tc>, window_params = [{transform_indices = @transform_0, window_bounds = array<i64: 1, 256>}, {pipeline_mode = #tpu.pipeline_mode<synchronous>, transform_indices = @transform_1, window_bounds = array<i64: 64, 1>}, {pipeline_mode = #tpu.pipeline_mode<synchronous>, transform_indices = @transform_2, window_bounds = array<i64: 64, 1>}, {pipeline_mode = #tpu.pipeline_mode<synchronous>, transform_indices = @transform_3, window_bounds = array<i64: 64, 64>}, {pipeline_mode = #tpu.pipeline_mode<synchronous>, transform_indices = @transform_4, window_bounds = array<i64: 64, 1>}, {pipeline_mode = #tpu.pipeline_mode<synchronous>, transform_indices = @transform_5, window_bounds = array<i64: 64, 64>}, {pipeline_mode = #tpu.pipeline_mode<synchronous>, transform_indices = @transform_6, window_bounds = array<i64: 64, 1>}, {pipeline_mode = #tpu.pipeline_mode<synchronous>, transform_indices = @transform_7, window_bounds = array<i64: 1, 64>}, {pipeline_mode = #tpu.pipeline_mode<synchronous>, transform_indices = @transform_8, window_bounds = array<i64: 1, 1>}, {transform_indices = @transform_9, window_bounds = array<i64: 1, 256>}]} {
    %c0 = arith.constant 0 : index
    %c0_0 = arith.constant 0 : index
    %0 = vector.load %arg1[%c0, %c0_0] : memref<1x256xf32, #tpu.memory_space<vmem>>, vector<1x256xf32>
    %c0_1 = arith.constant 0 : index
    %c0_2 = arith.constant 0 : index
    %1 = vector.load %arg2[%c0_1, %c0_2] : memref<64x1xf32, #tpu.memory_space<vmem>>, vector<64x1xf32>
    %2 = vector.broadcast %1 : vector<64x1xf32> to vector<64x256xf32>
    %3 = vector.broadcast %0 : vector<1x256xf32> to vector<64x256xf32>
    %4 = arith.mulf %2, %3 : vector<64x256xf32>
    %c0_3 = arith.constant 0 : index
    %c0_4 = arith.constant 0 : index
    %5 = vector.load %arg3[%c0_3, %c0_4] : memref<64x1xf32, #tpu.memory_space<vmem>>, vector<64x1xf32>
    %6 = vector.broadcast %5 : vector<64x1xf32> to vector<64x256xf32>
    %7 = arith.addf %4, %6 : vector<64x256xf32>
    %8 = math.tanh %7 : vector<64x256xf32>
    %c0_5 = arith.constant 0 : index
    %c0_6 = arith.constant 0 : index
    %9 = vector.load %arg4[%c0_5, %c0_6] : memref<64x64xbf16, #tpu.memory_space<vmem>>, vector<64x64xbf16>
    %10 = arith.truncf %8 : vector<64x256xf32> to vector<64x256xbf16>
    %cst = arith.constant dense<0.000000e+00> : vector<64x256xf32>
    %11 = tpu.matmul %9, %10, %cst {dimension_numbers = #tpu.dot_dimension_numbers<[1], [0], [0], [1], [0, 0, 1, 1], [], []>} : vector<64x64xbf16>, vector<64x256xbf16>, vector<64x256xf32> -> vector<64x256xf32>
    %c0_7 = arith.constant 0 : index
    %c0_8 = arith.constant 0 : index
    %12 = vector.load %arg5[%c0_7, %c0_8] : memref<64x1xf32, #tpu.memory_space<vmem>>, vector<64x1xf32>
    %13 = vector.broadcast %12 : vector<64x1xf32> to vector<64x256xf32>
    %14 = arith.addf %11, %13 : vector<64x256xf32>
    %15 = math.tanh %14 : vector<64x256xf32>
    %c0_9 = arith.constant 0 : index
    %c0_10 = arith.constant 0 : index
    %16 = vector.load %arg6[%c0_9, %c0_10] : memref<64x64xbf16, #tpu.memory_space<vmem>>, vector<64x64xbf16>
    %17 = arith.truncf %15 : vector<64x256xf32> to vector<64x256xbf16>
    %cst_11 = arith.constant dense<0.000000e+00> : vector<64x256xf32>
    %18 = tpu.matmul %16, %17, %cst_11 {dimension_numbers = #tpu.dot_dimension_numbers<[1], [0], [0], [1], [0, 0, 1, 1], [], []>} : vector<64x64xbf16>, vector<64x256xbf16>, vector<64x256xf32> -> vector<64x256xf32>
    %c0_12 = arith.constant 0 : index
    %c0_13 = arith.constant 0 : index
    %19 = vector.load %arg7[%c0_12, %c0_13] : memref<64x1xf32, #tpu.memory_space<vmem>>, vector<64x1xf32>
    %20 = vector.broadcast %19 : vector<64x1xf32> to vector<64x256xf32>
    %21 = arith.addf %18, %20 : vector<64x256xf32>
    %22 = math.tanh %21 : vector<64x256xf32>
    %c0_14 = arith.constant 0 : index
    %c0_15 = arith.constant 0 : index
    %23 = vector.load %arg8[%c0_14, %c0_15] : memref<1x64xbf16, #tpu.memory_space<vmem>>, vector<1x64xbf16>
    %24 = arith.truncf %22 : vector<64x256xf32> to vector<64x256xbf16>
    %cst_16 = arith.constant dense<0.000000e+00> : vector<1x256xf32>
    %25 = tpu.matmul %23, %24, %cst_16 {dimension_numbers = #tpu.dot_dimension_numbers<[1], [0], [0], [1], [0, 0, 1, 1], [], []>} : vector<1x64xbf16>, vector<64x256xbf16>, vector<1x256xf32> -> vector<1x256xf32>
    %c0_17 = arith.constant 0 : index
    %c0_18 = arith.constant 0 : index
    %26 = vector.load %arg9[%c0_17, %c0_18] : memref<1x1xf32, #tpu.memory_space<vmem>>, vector<1x1xf32>
    %27 = vector.broadcast %26 : vector<1x1xf32> to vector<1x256xf32>
    %28 = arith.addf %25, %27 : vector<1x256xf32>
    %c0_19 = arith.constant 0 : index
    %c0_20 = arith.constant 0 : index
    %29 = vector.load %arg10[%c0_19, %c0_20] : memref<1x256xf32, #tpu.memory_space<vmem>>, vector<1x256xf32>
    tpu.vector_store %arg10[%c0_19, %c0_20], %28 {strides = array<i32>} : memref<1x256xf32, #tpu.memory_space<vmem>>, vector<1x256xf32>,
    return
  }
  func.func @transform_0(%arg0: i32) -> (i32, i32) {
    %c0_i32 = arith.constant 0 : i32
    %c0_i32_0 = arith.constant 0 : i32
    return %c0_i32, %arg0 : i32, i32
  }
  func.func @transform_1(%arg0: i32) -> (i32, i32) {
    %c0_i32 = arith.constant 0 : i32
    %c0_i32_0 = arith.constant 0 : i32
    %c0_i32_1 = arith.constant 0 : i32
    return %c0_i32, %c0_i32_0 : i32, i32
  }
  func.func @transform_2(%arg0: i32) -> (i32, i32) {
    %c0_i32 = arith.constant 0 : i32
    %c0_i32_0 = arith.constant 0 : i32
    %c0_i32_1 = arith.constant 0 : i32
    return %c0_i32, %c0_i32_0 : i32, i32
  }
  func.func @transform_3(%arg0: i32) -> (i32, i32) {
    %c0_i32 = arith.constant 0 : i32
    %c0_i32_0 = arith.constant 0 : i32
    %c0_i32_1 = arith.constant 0 : i32
    return %c0_i32, %c0_i32_0 : i32, i32
  }
  func.func @transform_4(%arg0: i32) -> (i32, i32) {
    %c0_i32 = arith.constant 0 : i32
    %c0_i32_0 = arith.constant 0 : i32
    %c0_i32_1 = arith.constant 0 : i32
    return %c0_i32, %c0_i32_0 : i32, i32
  }
  func.func @transform_5(%arg0: i32) -> (i32, i32) {
    %c0_i32 = arith.constant 0 : i32
    %c0_i32_0 = arith.constant 0 : i32
    %c0_i32_1 = arith.constant 0 : i32
    return %c0_i32, %c0_i32_0 : i32, i32
  }
  func.func @transform_6(%arg0: i32) -> (i32, i32) {
    %c0_i32 = arith.constant 0 : i32
    %c0_i32_0 = arith.constant 0 : i32
    %c0_i32_1 = arith.constant 0 : i32
    return %c0_i32, %c0_i32_0 : i32, i32
  }
  func.func @transform_7(%arg0: i32) -> (i32, i32) {
    %c0_i32 = arith.constant 0 : i32
    %c0_i32_0 = arith.constant 0 : i32
    %c0_i32_1 = arith.constant 0 : i32
    return %c0_i32, %c0_i32_0 : i32, i32
  }
  func.func @transform_8(%arg0: i32) -> (i32, i32) {
    %c0_i32 = arith.constant 0 : i32
    %c0_i32_0 = arith.constant 0 : i32
    %c0_i32_1 = arith.constant 0 : i32
    return %c0_i32, %c0_i32_0 : i32, i32
  }
  func.func @transform_9(%arg0: i32) -> (i32, i32) {
    %c0_i32 = arith.constant 0 : i32
    %c0_i32_0 = arith.constant 0 : i32
    return %c0_i32, %arg0 : i32, i32
  }
}

</mosaic_0001>

<llo_original>
// kernel: tpu_custom_call.1
$region0: #{tpu_custom_call.1}
  #allocation0 [shape = 'u32[]', space=smem, size = 0x4, offset = 0x4, fixed_abs, tag = 'smem constant byte address 0x4 - core index']
  #allocation1 [shape = 'u32[144,128]{1,0:T(1,128)}', space=vmem, size = 0x12000, scoped, tag = 'internal scratch']
  #allocation2 [shape = 'f32[1,1]{1,0:T(1,128)S(1)}', space=vmem, size = 0x200, scoped, tag = 'scoped memory for tpu_custom_call.1']
  %s0 = inlined_call_operand.vmem [shape: f32[1,256], index: 0, kind: input, shape index: {}]
  %s1 = inlined_call_operand.vmem [shape: f32[64,1], index: 1, kind: input, shape index: {}]
  %s2 = inlined_call_operand.vmem [shape: f32[64,1], index: 2, kind: input, shape index: {}]
  %s3 = inlined_call_operand.vmem [shape: bf16[64,64], index: 3, kind: input, shape index: {}]
  %s4 = inlined_call_operand.vmem [shape: f32[64,1], index: 4, kind: input, shape index: {}]
  %s5 = inlined_call_operand.vmem [shape: bf16[64,64], index: 5, kind: input, shape index: {}]
  %s6 = inlined_call_operand.vmem [shape: f32[64,1], index: 6, kind: input, shape index: {}]
  %s7 = inlined_call_operand.vmem [shape: bf16[1,64], index: 7, kind: input, shape index: {}]
  %s8 = inlined_call_operand.<no memory space> [shape: f32[1,1], index: 8, kind: input, shape index: {}]
  %s9 = inlined_call_operand.hbm [shape: f32[1,256], index: 9, kind: output, shape index: {}]
  %s10 = sld [smem:[#allocation0]]
  $region46: #{tpu_custom_call.1} parent=0
    _
  %s12 = ssub.s32 1, %s10
  %s13 = scalar_select 0, %s12, %s10
  %v14 = vstv %s8
  %15 = vst [vmem:[#allocation2] sm:$0x1] %v14
  $region1: #{tpu_custom_call.1} parent=0
    #allocation3 [shape = 'u8[1024]{0}', space=vmem, size = 0x400, scoped, tag = 'output window, operand 0, single buffered']
    #allocation4 [shape = 's32[1]{0}', space=sflag, size = 0x4, scoped, tag = 'scoped memory for tpu_custom_call.1']
    %16 = vsyncpa [#allocation4], 0
    // Predicated region
    $region2: #{tpu_custom_call.1} parent=1 // pred_check
      _
    $region3: #{tpu_custom_call.1} parent=1 // pred_check_branch
      %18 = sbr.rel (0) target = $region5
    $region4: #{tpu_custom_call.1} parent=1 // pred_region
      _
    $region5: #{tpu_custom_call.1} parent=1 // pred_fallthru
      _
    // Predicated region
    $region6: #{tpu_custom_call.1} parent=1 // pred_check
      _
    $region7: #{tpu_custom_call.1} parent=1 // pred_check_branch
      %20 = sbr.rel (0) target = $region9
    $region8: #{tpu_custom_call.1} parent=1 // pred_region
      _
    $region9: #{tpu_custom_call.1} parent=1 // pred_fallthru
      _
    // Predicated region
    $region10: #{tpu_custom_call.1} parent=1 // pred_check
      _
    $region11: #{tpu_custom_call.1} parent=1 // pred_check_branch
      %22 = sbr.rel (0) target = $region13
    $region12: #{tpu_custom_call.1} parent=1 // pred_region
      _
    $region13: #{tpu_custom_call.1} parent=1 // pred_fallthru
      _
    // Predicated region
    $region14: #{tpu_custom_call.1} parent=1 // pred_check
      _
    $region15: #{tpu_custom_call.1} parent=1 // pred_check_branch
      %24 = sbr.rel (0) target = $region17
    $region16: #{tpu_custom_call.1} parent=1 // pred_region
      _
    $region17: #{tpu_custom_call.1} parent=1 // pred_fallthru
      _
    // Predicated region
    $region18: #{tpu_custom_call.1} parent=1 // pred_check
      _
    $region19: #{tpu_custom_call.1} parent=1 // pred_check_branch
      %26 = sbr.rel (0) target = $region21
    $region20: #{tpu_custom_call.1} parent=1 // pred_region
      _
    $region21: #{tpu_custom_call.1} parent=1 // pred_fallthru
      _
    // Predicated region
    $region22: #{tpu_custom_call.1} parent=1 // pred_check
      _
    $region23: #{tpu_custom_call.1} parent=1 // pred_check_branch
      %28 = sbr.rel (0) target = $region25
    $region24: #{tpu_custom_call.1} parent=1 // pred_region
      _
    $region25: #{tpu_custom_call.1} parent=1 // pred_fallthru
      _
    // Predicated region
    $region26: #{tpu_custom_call.1} parent=1 // pred_check
      _
    $region27: #{tpu_custom_call.1} parent=1 // pred_check_branch
      %30 = sbr.rel (0) target = $region29
    $region28: #{tpu_custom_call.1} parent=1 // pred_region
      _
    $region29: #{tpu_custom_call.1} parent=1 // pred_fallthru
      _
    // Predicated region
    $region30: #{tpu_custom_call.1} parent=1 // pred_check
      _
    $region31: #{tpu_custom_call.1} parent=1 // pred_check_branch
      %32 = sbr.rel (0) target = $region33
    $region32: #{tpu_custom_call.1} parent=1 // pred_region
      _
    $region33: #{tpu_custom_call.1} parent=1 // pred_fallthru
      _
    // Predicated region
    $region34: #{tpu_custom_call.1} parent=1 // pred_check
      _
    $region35: #{tpu_custom_call.1} parent=1 // pred_check_branch
      %34 = sbr.rel (0) target = $region37
    $region36: #{tpu_custom_call.1} parent=1 // pred_region
      _
    $region37: #{tpu_custom_call.1} parent=1 // pred_fallthru
      _
    %v36 = vld [vmem:[%s0] sm:$0x3]
    %v37 = vld [vmem:[%s1] sm:$0xff]
    %v38 = vld [vmem:[%s1 + $0x8] sm:$0xff]
    %v39 = vld [vmem:[%s1 + $0x10] sm:$0xff]
    %v40 = vld [vmem:[%s1 + $0x18] sm:$0xff]
    %v41 = vld [vmem:[%s1 + $0x20] sm:$0xff]
    %v42 = vld [vmem:[%s1 + $0x28] sm:$0xff]
    %v43 = vld [vmem:[%s1 + $0x30] sm:$0xff]
    %v44 = vld [vmem:[%s1 + $0x38] sm:$0xff]
    %46 = vset.pattern.permute.xlu0 0
    %47 = vperm.xlu0 %46, %v37
    %v48 = vpop.permute.xlu0 %47
    %51 = vset.pattern.permute.xlu0 0
    %52 = vperm.xlu0 %51, %v38
    %v53 = vpop.permute.xlu0 %52
    %56 = vset.pattern.permute.xlu0 0
    %57 = vperm.xlu0 %56, %v39
    %v58 = vpop.permute.xlu0 %57
    %61 = vset.pattern.permute.xlu0 0
    %62 = vperm.xlu0 %61, %v40
    %v63 = vpop.permute.xlu0 %62
    %66 = vset.pattern.permute.xlu0 0
    %67 = vperm.xlu0 %66, %v41
    %v68 = vpop.permute.xlu0 %67
    %71 = vset.pattern.permute.xlu0 0
    %72 = vperm.xlu0 %71, %v42
    %v73 = vpop.permute.xlu0 %72
    %76 = vset.pattern.permute.xlu0 0
    %77 = vperm.xlu0 %76, %v43
    %v78 = vpop.permute.xlu0 %77
    %81 = vset.pattern.permute.xlu0 0
    %82 = vperm.xlu0 %81, %v44
    %v83 = vpop.permute.xlu0 %82
    %v86 = vlaneseq
    %v87 = vshrl.u32 %v86, 7
    %v88 = vsub.s32 0, %v87
    %v89 = vrot.slane %v36, %v88
    %v90 = vlaneseq
    %v91 = vshrl.u32 %v90, 7
    %v92 = vsub.s32 1, %v91
    %v93 = vrot.slane %v36, %v92
    %v96 = vmul.f32 %v48, %v89
    %v97 = vmul.f32 %v48, %v93
    %v98 = vmul.f32 %v53, %v89
    %v99 = vmul.f32 %v53, %v93
    %v100 = vmul.f32 %v58, %v89
    %v101 = vmul.f32 %v58, %v93
    %v102 = vmul.f32 %v63, %v89
    %v103 = vmul.f32 %v63, %v93
    %v104 = vmul.f32 %v68, %v89
    %v105 = vmul.f32 %v68, %v93
    %v106 = vmul.f32 %v73, %v89
    %v107 = vmul.f32 %v73, %v93
    %v108 = vmul.f32 %v78, %v89
    %v109 = vmul.f32 %v78, %v93
    %v110 = vmul.f32 %v83, %v89
    %v111 = vmul.f32 %v83, %v93
    %v112 = vld [vmem:[%s2] sm:$0xff]
    %v113 = vld [vmem:[%s2 + $0x8] sm:$0xff]
    %v114 = vld [vmem:[%s2 + $0x10] sm:$0xff]
    %v115 = vld [vmem:[%s2 + $0x18] sm:$0xff]
    %v116 = vld [vmem:[%s2 + $0x20] sm:$0xff]
    %v117 = vld [vmem:[%s2 + $0x28] sm:$0xff]
    %v118 = vld [vmem:[%s2 + $0x30] sm:$0xff]
    %v119 = vld [vmem:[%s2 + $0x38] sm:$0xff]
    %121 = vset.pattern.permute.xlu0 0
    %122 = vperm.xlu0 %121, %v112
    %v123 = vpop.permute.xlu0 %122
    %126 = vset.pattern.permute.xlu0 0
    %127 = vperm.xlu0 %126, %v113
    %v128 = vpop.permute.xlu0 %127
    %131 = vset.pattern.permute.xlu0 0
    %132 = vperm.xlu0 %131, %v114
    %v133 = vpop.permute.xlu0 %132
    %136 = vset.pattern.permute.xlu0 0
    %137 = vperm.xlu0 %136, %v115
    %v138 = vpop.permute.xlu0 %137
    %141 = vset.pattern.permute.xlu0 0
    %142 = vperm.xlu0 %141, %v116
    %v143 = vpop.permute.xlu0 %142
    %146 = vset.pattern.permute.xlu0 0
    %147 = vperm.xlu0 %146, %v117
    %v148 = vpop.permute.xlu0 %147
    %151 = vset.pattern.permute.xlu0 0
    %152 = vperm.xlu0 %151, %v118
    %v153 = vpop.permute.xlu0 %152
    %156 = vset.pattern.permute.xlu0 0
    %157 = vperm.xlu0 %156, %v119
    %v158 = vpop.permute.xlu0 %157
    %v160 = vadd.f32 %v96, %v123
    %v161 = vadd.f32 %v97, %v123
    %v162 = vadd.f32 %v98, %v128
    %v163 = vadd.f32 %v99, %v128
    %v164 = vadd.f32 %v100, %v133
    %v165 = vadd.f32 %v101, %v133
    %v166 = vadd.f32 %v102, %v138
    %v167 = vadd.f32 %v103, %v138
    %v168 = vadd.f32 %v104, %v143
    %v169 = vadd.f32 %v105, %v143
    %v170 = vadd.f32 %v106, %v148
    %v171 = vadd.f32 %v107, %v148
    %v172 = vadd.f32 %v108, %v153
    %v173 = vadd.f32 %v109, %v153
    %v174 = vadd.f32 %v110, %v158
    %v175 = vadd.f32 %v111, %v158
    %v176 = vtanh.pop %v160
    %v177 = vtanh.pop %v161
    %v178 = vtanh.pop %v162
    %v179 = vtanh.pop %v163
    %v180 = vtanh.pop %v164
    %v181 = vtanh.pop %v165
    %v182 = vtanh.pop %v166
    %v183 = vtanh.pop %v167
    %v184 = vtanh.pop %v168
    %v185 = vtanh.pop %v169
    %v186 = vtanh.pop %v170
    %v187 = vtanh.pop %v171
    %v188 = vtanh.pop %v172
    %v189 = vtanh.pop %v173
    %v190 = vtanh.pop %v174
    %v191 = vtanh.pop %v175
    %v192 = vld [vmem:[%s3] sm:$0xf]
    %v193 = vld [vmem:[%s3 + $0x4] sm:$0xf]
    %v194 = vld [vmem:[%s3 + $0x8] sm:$0xf]
    %v195 = vld [vmem:[%s3 + $0xc] sm:$0xf]
    %v196 = vld [vmem:[%s3 + $0x10] sm:$0xf]
    %v197 = vld [vmem:[%s3 + $0x14] sm:$0xf]
    %v198 = vld [vmem:[%s3 + $0x18] sm:$0xf]
    %v199 = vld [vmem:[%s3 + $0x1c] sm:$0xf]
    %v200 = vpack.c.bf16 %v178, %v176
    %v201 = vpack.c.bf16 %v179, %v177
    %v202 = vpack.c.bf16 %v182, %v180
    %v203 = vpack.c.bf16 %v183, %v181
    %v204 = vpack.c.bf16 %v186, %v184
    %v205 = vpack.c.bf16 %v187, %v185
    %v206 = vpack.c.bf16 %v190, %v188
    %v207 = vpack.c.bf16 %v191, %v189
    %v208 = vld [vmem:[%s4] sm:$0xff]
    %v209 = vld [vmem:[%s4 + $0x8] sm:$0xff]
    %v210 = vld [vmem:[%s4 + $0x10] sm:$0xff]
    %v211 = vld [vmem:[%s4 + $0x18] sm:$0xff]
    %v212 = vld [vmem:[%s4 + $0x20] sm:$0xff]
    %v213 = vld [vmem:[%s4 + $0x28] sm:$0xff]
    %v214 = vld [vmem:[%s4 + $0x30] sm:$0xff]
    %v215 = vld [vmem:[%s4 + $0x38] sm:$0xff]
    %217 = vset.pattern.permute.xlu0 0
    %218 = vperm.xlu0 %217, %v208
    %v219 = vpop.permute.xlu0 %218
    %222 = vset.pattern.permute.xlu0 0
    %223 = vperm.xlu0 %222, %v209
    %v224 = vpop.permute.xlu0 %223
    %227 = vset.pattern.permute.xlu0 0
    %228 = vperm.xlu0 %227, %v210
    %v229 = vpop.permute.xlu0 %228
    %232 = vset.pattern.permute.xlu0 0
    %233 = vperm.xlu0 %232, %v211
    %v234 = vpop.permute.xlu0 %233
    %237 = vset.pattern.permute.xlu0 0
    %238 = vperm.xlu0 %237, %v212
    %v239 = vpop.permute.xlu0 %238
    %242 = vset.pattern.permute.xlu0 0
    %243 = vperm.xlu0 %242, %v213
    %v244 = vpop.permute.xlu0 %243
    %247 = vset.pattern.permute.xlu0 0
    %248 = vperm.xlu0 %247, %v214
    %v249 = vpop.permute.xlu0 %248
    %252 = vset.pattern.permute.xlu0 0
    %253 = vperm.xlu0 %252, %v215
    %v254 = vpop.permute.xlu0 %253
    %v264 = vunpack.c.l.b16 %v192
    %v265 = vunpack.c.l.b16 %v193
    %v266 = vunpack.c.l.b16 %v194
    %v267 = vunpack.c.l.b16 %v195
    %v268 = vunpack.c.l.b16 %v196
    %v269 = vunpack.c.l.b16 %v197
    %v270 = vunpack.c.l.b16 %v198
    %v271 = vunpack.c.l.b16 %v199
    %v272 = vpack.c.b16 %v265, %v264
    %v273 = vpack.c.b16 %v267, %v266
    %v274 = vpack.c.b16 %v269, %v268
    %v275 = vpack.c.b16 %v271, %v270
    %vm276 = vcmask 523264
    %v278 = vsel %vm276, %v272, 0
    %v281 = vsel %vm276, %v273, 0
    %v284 = vsel %vm276, %v274, 0
    %v287 = vsel %vm276, %v275, 0
    %289 = vmatprep.subr.bf16.mxu0 %v201
    %290 = vmatpush1.bf16.msra.mxu0 %v200
    %291 = vmatprep.subr.bf16.mxu0 %v203
    %292 = vmatpush1.bf16.msra.mxu0 %v202
    %293 = vmatprep.subr.bf16.mxu0 %v205
    %294 = vmatpush1.bf16.msra.mxu0 %v204
    %295 = vmatprep.subr.bf16.mxu0 %v207
    %296 = vmatpush1.bf16.msra.mxu0 %v206
    %297 = vmatprep.subr.bf16.mxu0 0
    %298 = vmatpush1.bf16.msra.mxu0 0
    %299 = vmatprep.subr.bf16.mxu0 0
    %300 = vmatpush1.bf16.msra.mxu0 0
    %301 = vmatprep.subr.bf16.mxu0 0
    %302 = vmatpush1.bf16.msra.mxu0 0
    %303 = vmatprep.subr.bf16.mxu0 0
    %304 = vmatpush1.bf16.msra.mxu0 0
    %305 = vmatprep.subr.bf16.mxu0 0
    %306 = vmatpush1.bf16.msra.mxu0 0
    %307 = vmatprep.subr.bf16.mxu0 0
    %308 = vmatpush1.bf16.msra.mxu0 0
    %309 = vmatprep.subr.bf16.mxu0 0
    %310 = vmatpush1.bf16.msra.mxu0 0
    %311 = vmatprep.subr.bf16.mxu0 0
    %312 = vmatpush1.bf16.msra.mxu0 0
    %313 = vmatprep.subr.bf16.mxu0 0
    %314 = vmatpush1.bf16.msra.mxu0 0
    %315 = vmatprep.subr.bf16.mxu0 0
    %316 = vmatpush1.bf16.msra.mxu0 0
    %317 = vmatprep.subr.bf16.mxu0 0
    %318 = vmatpush1.bf16.msra.mxu0 0
    %319 = vmatprep.subr.bf16.mxu0 0
    %320 = vmatpush1.bf16.msra.mxu0 0
    %321 = vmatprep.mubr.bf16.mxu0 0
    %322 = vmatmul.mubr.bf16.gmra.mrb[0].mxu0 %v278
    %v323 = vpop.f32.mrb[0].mxu0
    %v324 = vadd.f32 %v219, %v323
    %v325 = vpop.f32.mrb[0].mxu0
    %v326 = vadd.f32 %v219, %v325
    %v327 = vpop.f32.mrb[0].mxu0
    %v328 = vadd.f32 %v224, %v327
    %v329 = vpop.f32.mrb[0].mxu0
    %v330 = vadd.f32 %v224, %v329
    %331 = vmatprep.mubr.bf16.mxu0 0
    %332 = vmatmul.mubr.bf16.gmra.mrb[0].mxu0 %v281
    %v333 = vpop.f32.mrb[0].mxu0
    %v334 = vadd.f32 %v229, %v333
    %v335 = vpop.f32.mrb[0].mxu0
    %v336 = vadd.f32 %v229, %v335
    %v337 = vpop.f32.mrb[0].mxu0
    %v338 = vadd.f32 %v234, %v337
    %v339 = vpop.f32.mrb[0].mxu0
    %v340 = vadd.f32 %v234, %v339
    %341 = vmatprep.mubr.bf16.mxu0 0
    %342 = vmatmul.mubr.bf16.gmra.mrb[0].mxu0 %v284
    %v343 = vpop.f32.mrb[0].mxu0
    %v344 = vadd.f32 %v239, %v343
    %v345 = vpop.f32.mrb[0].mxu0
    %v346 = vadd.f32 %v239, %v345
    %v347 = vpop.f32.mrb[0].mxu0
    %v348 = vadd.f32 %v244, %v347
    %v349 = vpop.f32.mrb[0].mxu0
    %v350 = vadd.f32 %v244, %v349
    %351 = vmatprep.mubr.bf16.mxu0 0
    %352 = vmatmul.mubr.bf16.gmra.mrb[0].mxu0 %v287
    %v353 = vpop.f32.mrb[0].mxu0
    %v354 = vadd.f32 %v249, %v353
    %v355 = vpop.f32.mrb[0].mxu0
    %v356 = vadd.f32 %v249, %v355
    %v357 = vpop.f32.mrb[0].mxu0
    %v358 = vadd.f32 %v254, %v357
    %v359 = vpop.f32.mrb[0].mxu0
    %v360 = vadd.f32 %v254, %v359
    %361 = vdwg.mxu0
    %v362 = vtanh.pop %v324
    %v363 = vtanh.pop %v326
    %v364 = vtanh.pop %v328
    %v365 = vtanh.pop %v330
    %v366 = vtanh.pop %v334
    %v367 = vtanh.pop %v336
    %v368 = vtanh.pop %v338
    %v369 = vtanh.pop %v340
    %v370 = vtanh.pop %v344
    %v371 = vtanh.pop %v346
    %v372 = vtanh.pop %v348
    %v373 = vtanh.pop %v350
    %v374 = vtanh.pop %v354
    %v375 = vtanh.pop %v356
    %v376 = vtanh.pop %v358
    %v377 = vtanh.pop %v360
    %v378 = vld [vmem:[%s5] sm:$0xf]
    %v379 = vld [vmem:[%s5 + $0x4] sm:$0xf]
    %v380 = vld [vmem:[%s5 + $0x8] sm:$0xf]
    %v381 = vld [vmem:[%s5 + $0xc] sm:$0xf]
    %v382 = vld [vmem:[%s5 + $0x10] sm:$0xf]
    %v383 = vld [vmem:[%s5 + $0x14] sm:$0xf]
    %v384 = vld [vmem:[%s5 + $0x18] sm:$0xf]
    %v385 = vld [vmem:[%s5 + $0x1c] sm:$0xf]
    %v386 = vpack.c.bf16 %v364, %v362
    %v387 = vpack.c.bf16 %v365, %v363
    %v388 = vpack.c.bf16 %v368, %v366
    %v389 = vpack.c.bf16 %v369, %v367
    %v390 = vpack.c.bf16 %v372, %v370
    %v391 = vpack.c.bf16 %v373, %v371
    %v392 = vpack.c.bf16 %v376, %v374
    %v393 = vpack.c.bf16 %v377, %v375
    %v394 = vld [vmem:[%s6] sm:$0xff]
    %v395 = vld [vmem:[%s6 + $0x8] sm:$0xff]
    %v396 = vld [vmem:[%s6 + $0x10] sm:$0xff]
    %v397 = vld [vmem:[%s6 + $0x18] sm:$0xff]
    %v398 = vld [vmem:[%s6 + $0x20] sm:$0xff]
    %v399 = vld [vmem:[%s6 + $0x28] sm:$0xff]
    %v400 = vld [vmem:[%s6 + $0x30] sm:$0xff]
    %v401 = vld [vmem:[%s6 + $0x38] sm:$0xff]
    %403 = vset.pattern.permute.xlu0 0
    %404 = vperm.xlu0 %403, %v394
    %v405 = vpop.permute.xlu0 %404
    %408 = vset.pattern.permute.xlu0 0
    %409 = vperm.xlu0 %408, %v395
    %v410 = vpop.permute.xlu0 %409
    %413 = vset.pattern.permute.xlu0 0
    %414 = vperm.xlu0 %413, %v396
    %v415 = vpop.permute.xlu0 %414
    %418 = vset.pattern.permute.xlu0 0
    %419 = vperm.xlu0 %418, %v397
    %v420 = vpop.permute.xlu0 %419
    %423 = vset.pattern.permute.xlu0 0
    %424 = vperm.xlu0 %423, %v398
    %v425 = vpop.permute.xlu0 %424
    %428 = vset.pattern.permute.xlu0 0
    %429 = vperm.xlu0 %428, %v399
    %v430 = vpop.permute.xlu0 %429
    %433 = vset.pattern.permute.xlu0 0
    %434 = vperm.xlu0 %433, %v400
    %v435 = vpop.permute.xlu0 %434
    %438 = vset.pattern.permute.xlu0 0
    %439 = vperm.xlu0 %438, %v401
    %v440 = vpop.permute.xlu0 %439
    %v450 = vunpack.c.l.b16 %v378
    %v451 = vunpack.c.l.b16 %v379
    %v452 = vunpack.c.l.b16 %v380
    %v453 = vunpack.c.l.b16 %v381
    %v454 = vunpack.c.l.b16 %v382
    %v455 = vunpack.c.l.b16 %v383
    %v456 = vunpack.c.l.b16 %v384
    %v457 = vunpack.c.l.b16 %v385
    %v458 = vpack.c.b16 %v451, %v450
    %v459 = vpack.c.b16 %v453, %v452
    %v460 = vpack.c.b16 %v455, %v454
    %v461 = vpack.c.b16 %v457, %v456
    %v463 = vsel %vm276, %v458, 0
    %v466 = vsel %vm276, %v459, 0
    %v469 = vsel %vm276, %v460, 0
    %v472 = vsel %vm276, %v461, 0
    %474 = vmatprep.subr.bf16.mxu0 %v387
    %475 = vmatpush1.bf16.msra.mxu0 %v386
    %476 = vmatprep.subr.bf16.mxu0 %v389
    %477 = vmatpush1.bf16.msra.mxu0 %v388
    %478 = vmatprep.subr.bf16.mxu0 %v391
    %479 = vmatpush1.bf16.msra.mxu0 %v390
    %480 = vmatprep.subr.bf16.mxu0 %v393
    %481 = vmatpush1.bf16.msra.mxu0 %v392
    %482 = vmatprep.subr.bf16.mxu0 0
    %483 = vmatpush1.bf16.msra.mxu0 0
    %484 = vmatprep.subr.bf16.mxu0 0
    %485 = vmatpush1.bf16.msra.mxu0 0
    %486 = vmatprep.subr.bf16.mxu0 0
    %487 = vmatpush1.bf16.msra.mxu0 0
    %488 = vmatprep.subr.bf16.mxu0 0
    %489 = vmatpush1.bf16.msra.mxu0 0
    %490 = vmatprep.subr.bf16.mxu0 0
    %491 = vmatpush1.bf16.msra.mxu0 0
    %492 = vmatprep.subr.bf16.mxu0 0
    %493 = vmatpush1.bf16.msra.mxu0 0
    %494 = vmatprep.subr.bf16.mxu0 0
    %495 = vmatpush1.bf16.msra.mxu0 0
    %496 = vmatprep.subr.bf16.mxu0 0
    %497 = vmatpush1.bf16.msra.mxu0 0
    %498 = vmatprep.subr.bf16.mxu0 0
    %499 = vmatpush1.bf16.msra.mxu0 0
    %500 = vmatprep.subr.bf16.mxu0 0
    %501 = vmatpush1.bf16.msra.mxu0 0
    %502 = vmatprep.subr.bf16.mxu0 0
    %503 = vmatpush1.bf16.msra.mxu0 0
    %504 = vmatprep.subr.bf16.mxu0 0
    %505 = vmatpush1.bf16.msra.mxu0 0
    %506 = vmatprep.mubr.bf16.mxu0 0
    %507 = vmatmul.mubr.bf16.gmra.mrb[0].mxu0 %v463
    %v508 = vpop.f32.mrb[0].mxu0
    %v509 = vadd.f32 %v405, %v508
    %v510 = vpop.f32.mrb[0].mxu0
    %v511 = vadd.f32 %v405, %v510
    %v512 = vpop.f32.mrb[0].mxu0
    %v513 = vadd.f32 %v410, %v512
    %v514 = vpop.f32.mrb[0].mxu0
    %v515 = vadd.f32 %v410, %v514
    %516 = vmatprep.mubr.bf16.mxu0 0
    %517 = vmatmul.mubr.bf16.gmra.mrb[0].mxu0 %v466
    %v518 = vpop.f32.mrb[0].mxu0
    %v519 = vadd.f32 %v415, %v518
    %v520 = vpop.f32.mrb[0].mxu0
    %v521 = vadd.f32 %v415, %v520
    %v522 = vpop.f32.mrb[0].mxu0
    %v523 = vadd.f32 %v420, %v522
    %v524 = vpop.f32.mrb[0].mxu0
    %v525 = vadd.f32 %v420, %v524
    %526 = vmatprep.mubr.bf16.mxu0 0
    %527 = vmatmul.mubr.bf16.gmra.mrb[0].mxu0 %v469
    %v528 = vpop.f32.mrb[0].mxu0
    %v529 = vadd.f32 %v425, %v528
    %v530 = vpop.f32.mrb[0].mxu0
    %v531 = vadd.f32 %v425, %v530
    %v532 = vpop.f32.mrb[0].mxu0
    %v533 = vadd.f32 %v430, %v532
    %v534 = vpop.f32.mrb[0].mxu0
    %v535 = vadd.f32 %v430, %v534
    %536 = vmatprep.mubr.bf16.mxu0 0
    %537 = vmatmul.mubr.bf16.gmra.mrb[0].mxu0 %v472
    %v538 = vpop.f32.mrb[0].mxu0
    %v539 = vadd.f32 %v435, %v538
    %v540 = vpop.f32.mrb[0].mxu0
    %v541 = vadd.f32 %v435, %v540
    %v542 = vpop.f32.mrb[0].mxu0
    %v543 = vadd.f32 %v440, %v542
    %v544 = vpop.f32.mrb[0].mxu0
    %v545 = vadd.f32 %v440, %v544
    %546 = vdwg.mxu0
    %v547 = vtanh.pop %v509
    %v548 = vtanh.pop %v511
    %v549 = vtanh.pop %v513
    %v550 = vtanh.pop %v515
    %v551 = vtanh.pop %v519
    %v552 = vtanh.pop %v521
    %v553 = vtanh.pop %v523
    %v554 = vtanh.pop %v525
    %v555 = vtanh.pop %v529
    %v556 = vtanh.pop %v531
    %v557 = vtanh.pop %v533
    %v558 = vtanh.pop %v535
    %v559 = vtanh.pop %v539
    %v560 = vtanh.pop %v541
    %v561 = vtanh.pop %v543
    %v562 = vtanh.pop %v545
    %v563 = vld [vmem:[%s7] sm:$0x1]
    %v564 = vpack.c.bf16 %v549, %v547
    %v565 = vpack.c.bf16 %v550, %v548
    %v566 = vpack.c.bf16 %v553, %v551
    %v567 = vpack.c.bf16 %v554, %v552
    %v568 = vpack.c.bf16 %v557, %v555
    %v569 = vpack.c.bf16 %v558, %v556
    %v570 = vpack.c.bf16 %v561, %v559
    %v571 = vpack.c.bf16 %v562, %v560
    %v572 = vld [vmem:[#allocation2] sm:$0x1]
    %574 = vset.pattern.permute.xlu0 0
    %575 = vperm.xlu0 %574, %v572
    %v576 = vpop.permute.xlu0 %575
    %v578 = vlaneseq
    %v579 = vshrl.u32 %v578, 7
    %v580 = vsub.s32 0, %v579
    %v581 = vrot.slane %v576, %v580
    %v583 = vsel %vm276, %v563, 0
    %585 = vmatprep.subr.bf16.mxu0 %v565
    %586 = vmatpush1.bf16.msra.mxu0 %v564
    %587 = vmatprep.subr.bf16.mxu0 %v567
    %588 = vmatpush1.bf16.msra.mxu0 %v566
    %589 = vmatprep.subr.bf16.mxu0 %v569
    %590 = vmatpush1.bf16.msra.mxu0 %v568
    %591 = vmatprep.subr.bf16.mxu0 %v571
    %592 = vmatpush1.bf16.msra.mxu0 %v570
    %593 = vmatprep.subr.bf16.mxu0 0
    %594 = vmatpush1.bf16.msra.mxu0 0
    %595 = vmatprep.subr.bf16.mxu0 0
    %596 = vmatpush1.bf16.msra.mxu0 0
    %597 = vmatprep.subr.bf16.mxu0 0
    %598 = vmatpush1.bf16.msra.mxu0 0
    %599 = vmatprep.subr.bf16.mxu0 0
    %600 = vmatpush1.bf16.msra.mxu0 0
    %601 = vmatprep.subr.bf16.mxu0 0
    %602 = vmatpush1.bf16.msra.mxu0 0
    %603 = vmatprep.subr.bf16.mxu0 0
    %604 = vmatpush1.bf16.msra.mxu0 0
    %605 = vmatprep.subr.bf16.mxu0 0
    %606 = vmatpush1.bf16.msra.mxu0 0
    %607 = vmatprep.subr.bf16.mxu0 0
    %608 = vmatpush1.bf16.msra.mxu0 0
    %609 = vmatprep.subr.bf16.mxu0 0
    %610 = vmatpush1.bf16.msra.mxu0 0
    %611 = vmatprep.subr.bf16.mxu0 0
    %612 = vmatpush1.bf16.msra.mxu0 0
    %613 = vmatprep.subr.bf16.mxu0 0
    %614 = vmatpush1.bf16.msra.mxu0 0
    %615 = vmatprep.subr.bf16.mxu0 0
    %616 = vmatpush1.bf16.msra.mxu0 0
    %617 = vmatprep.mubr.bf16.mxu0 0
    %618 = vmatmul.mubr.bf16.gmra.mrb[0].mxu0 %v583
    %v619 = vpop.f32.mrb[0].mxu0
    %v620 = vadd.f32 %v581, %v619
    %v621 = vpop.f32.mrb[0].mxu0
    %v622 = vadd.f32 %v581, %v621
    %v623 = vpop.f32.mrb[0].mxu0
    %v624 = vpop.f32.mrb[0].mxu0
    %625 = vdwg.mxu0
    %v628 = vcombine.low %v620, %v622
    %v630 = vunpack.c.l.s4 1966171168
    %v631 = vunpack.c.0.s8 %v630
    %v632 = vlaneseq
    %v633 = vshrl.u32 %v632, 7
    %v634 = vsub.s32 %v631, %v633
    %v635 = vrot.slane %v628, %v634
    %v637 = vunpack.c.l.s4 1966171168
    %v638 = vunpack.c.0.s8 %v637
    %v639 = vlaneseq
    %v640 = vshrl.u32 %v639, 7
    %v641 = vsub.s32 %v638, %v640
    %v642 = vrot.slane %v635, %v641
    %v644 = vlaneseq
    %vm645 = vcmp.ge.s32.totalorder %v644, 0
    %vm646 = vcmp.lt.s32.totalorder %v644, 256
    %vm647 = vmand %vm645, %vm646
    %648 = vst.msk [vmem:[#allocation3] sm:$0x3] %vm647, %v642
    // Predicated region
    $region38: #{tpu_custom_call.1} parent=1 // pred_check
      _
    $region39: #{tpu_custom_call.1} parent=1 // pred_check_branch
      %650 = sbr.rel (0) target = $region41
    $region40: #{tpu_custom_call.1} parent=1 // pred_region
      %s652 = ssub.s32 32, 32
      %653 = vsyncadd [#allocation4], %s652
      %s655 = sshll.u32 [#allocation3], 4
      %s656 = int_to_ptr.vmem [resolvable:$true] %s655
      %658 = dma.vmem_to_hbm [thread:$0]  %s656, 32, %s9, [#allocation4]
    $region41: #{tpu_custom_call.1} parent=1 // pred_fallthru
      _
    // Predicated region
    $region42: #{tpu_custom_call.1} parent=1 // pred_check
      _
    $region43: #{tpu_custom_call.1} parent=1 // pred_check_branch
      %660 = sbr.rel (0) target = $region45
    $region44: #{tpu_custom_call.1} parent=1 // pred_region
      %661 = dma.done [#allocation4], 32
    $region45: #{tpu_custom_call.1} parent=1 // pred_fallthru
      _
    %662 = vsyncpa [#allocation4], 1

// kernel: tpu_custom_call.1
$region0: #{tpu_custom_call.1}
  #allocation0 [shape = 'u32[]', space=smem, size = 0x4, offset = 0x4, fixed_abs, tag = 'smem constant byte address 0x4 - core index']
  #allocation1 [shape = 'u32[144,128]{1,0:T(1,128)}', space=vmem, size = 0x12000, scoped, tag = 'internal scratch']
  #allocation2 [shape = 'f32[1,1]{1,0:T(1,128)S(1)}', space=vmem, size = 0x200, scoped, tag = 'scoped memory for tpu_custom_call.1']
  %s0 = inlined_call_operand.vmem [shape: f32[1,256], index: 0, kind: input, shape index: {}]
  %s1 = inlined_call_operand.vmem [shape: f32[64,1], index: 1, kind: input, shape index: {}]
  %s2 = inlined_call_operand.vmem [shape: f32[64,1], index: 2, kind: input, shape index: {}]
  %s3 = inlined_call_operand.vmem [shape: bf16[64,64], index: 3, kind: input, shape index: {}]
  %s4 = inlined_call_operand.vmem [shape: f32[64,1], index: 4, kind: input, shape index: {}]
  %s5 = inlined_call_operand.vmem [shape: bf16[64,64], index: 5, kind: input, shape index: {}]
  %s6 = inlined_call_operand.vmem [shape: f32[64,1], index: 6, kind: input, shape index: {}]
  %s7 = inlined_call_operand.vmem [shape: bf16[1,64], index: 7, kind: input, shape index: {}]
  %s8 = inlined_call_operand.<no memory space> [shape: f32[1,1], index: 8, kind: input, shape index: {}]
  %s9 = inlined_call_operand.hbm [shape: f32[1,256], index: 9, kind: output, shape index: {}]
  %s10 = sld [smem:[#allocation0]]
  $region46: #{tpu_custom_call.1} parent=0
    _
  %s12 = ssub.s32 1, %s10
  %s13 = scalar_select 0, %s12, %s10
  %v14 = vstv %s8
  %15 = vst [vmem:[#allocation2] sm:$0x1] %v14
  $region1: #{tpu_custom_call.1} parent=0
    #allocation3 [shape = 'u8[1024]{0}', space=vmem, size = 0x400, scoped, tag = 'output window, operand 0, single buffered']
    #allocation4 [shape = 's32[1]{0}', space=sflag, size = 0x4, scoped, tag = 'scoped memory for tpu_custom_call.1']
    %16 = vsyncpa [#allocation4], 0
    // Predicated region
    $region2: #{tpu_custom_call.1} parent=1 // pred_check
      _
    $region3: #{tpu_custom_call.1} parent=1 // pred_check_branch
      %18 = sbr.rel (0) target = $region5
    $region4: #{tpu_custom_call.1} parent=1 // pred_region
      _
    $region5: #{tpu_custom_call.1} parent=1 // pred_fallthru
      _
    // Predicated region
    $region6: #{tpu_custom_call.1} parent=1 // pred_check
      _
    $region7: #{tpu_custom_call.1} parent=1 // pred_check_branch
      %20 = sbr.rel (0) target = $region9
    $region8: #{tpu_custom_call.1} parent=1 // pred_region
      _
    $region9: #{tpu_custom_call.1} parent=1 // pred_fallthru
      _
    // Predicated region
    $region10: #{tpu_custom_call.1} parent=1 // pred_check
      _
    $region11: #{tpu_custom_call.1} parent=1 // pred_check_branch
      %22 = sbr.rel (0) target = $region13
    $region12: #{tpu_custom_call.1} parent=1 // pred_region
      _
    $region13: #{tpu_custom_call.1} parent=1 // pred_fallthru
      _
    // Predicated region
    $region14: #{tpu_custom_call.1} parent=1 // pred_check
      _
    $region15: #{tpu_custom_call.1} parent=1 // pred_check_branch
      %24 = sbr.rel (0) target = $region17
    $region16: #{tpu_custom_call.1} parent=1 // pred_region
      _
    $region17: #{tpu_custom_call.1} parent=1 // pred_fallthru
      _
    // Predicated region
    $region18: #{tpu_custom_call.1} parent=1 // pred_check
      _
    $region19: #{tpu_custom_call.1} parent=1 // pred_check_branch
      %26 = sbr.rel (0) target = $region21
    $region20: #{tpu_custom_call.1} parent=1 // pred_region
      _
    $region21: #{tpu_custom_call.1} parent=1 // pred_fallthru
      _
    // Predicated region
    $region22: #{tpu_custom_call.1} parent=1 // pred_check
      _
    $region23: #{tpu_custom_call.1} parent=1 // pred_check_branch
      %28 = sbr.rel (0) target = $region25
    $region24: #{tpu_custom_call.1} parent=1 // pred_region
      _
    $region25: #{tpu_custom_call.1} parent=1 // pred_fallthru
      _
    // Predicated region
    $region26: #{tpu_custom_call.1} parent=1 // pred_check
      _
    $region27: #{tpu_custom_call.1} parent=1 // pred_check_branch
      %30 = sbr.rel (0) target = $region29
    $region28: #{tpu_custom_call.1} parent=1 // pred_region
      _
    $region29: #{tpu_custom_call.1} parent=1 // pred_fallthru
      _
    // Predicated region
    $region30: #{tpu_custom_call.1} parent=1 // pred_check
      _
    $region31: #{tpu_custom_call.1} parent=1 // pred_check_branch
      %32 = sbr.rel (0) target = $region33
    $region32: #{tpu_custom_call.1} parent=1 // pred_region
      _
    $region33: #{tpu_custom_call.1} parent=1 // pred_fallthru
      _
    // Predicated region
    $region34: #{tpu_custom_call.1} parent=1 // pred_check
      _
    $region35: #{tpu_custom_call.1} parent=1 // pred_check_branch
      %34 = sbr.rel (0) target = $region37
    $region36: #{tpu_custom_call.1} parent=1 // pred_region
      _
    $region37: #{tpu_custom_call.1} parent=1 // pred_fallthru
      _
    %v36 = vld [vmem:[%s0] sm:$0x3]
    %v37 = vld [vmem:[%s1] sm:$0xff]
    %v38 = vld [vmem:[%s1 + $0x8] sm:$0xff]
    %v39 = vld [vmem:[%s1 + $0x10] sm:$0xff]
    %v40 = vld [vmem:[%s1 + $0x18] sm:$0xff]
    %v41 = vld [vmem:[%s1 + $0x20] sm:$0xff]
    %v42 = vld [vmem:[%s1 + $0x28] sm:$0xff]
    %v43 = vld [vmem:[%s1 + $0x30] sm:$0xff]
    %v44 = vld [vmem:[%s1 + $0x38] sm:$0xff]
    %46 = vset.pattern.permute.xlu0 0
    %47 = vperm.xlu0 %46, %v37
    %v48 = vpop.permute.xlu0 %47
    %51 = vset.pattern.permute.xlu0 0
    %52 = vperm.xlu0 %51, %v38
    %v53 = vpop.permute.xlu0 %52
    %56 = vset.pattern.permute.xlu0 0
    %57 = vperm.xlu0 %56, %v39
    %v58 = vpop.permute.xlu0 %57
    %61 = vset.pattern.permute.xlu0 0
    %62 = vperm.xlu0 %61, %v40
    %v63 = vpop.permute.xlu0 %62
    %66 = vset.pattern.permute.xlu0 0
    %67 = vperm.xlu0 %66, %v41
    %v68 = vpop.permute.xlu0 %67
    %71 = vset.pattern.permute.xlu0 0
    %72 = vperm.xlu0 %71, %v42
    %v73 = vpop.permute.xlu0 %72
    %76 = vset.pattern.permute.xlu0 0
    %77 = vperm.xlu0 %76, %v43
    %v78 = vpop.permute.xlu0 %77
    %81 = vset.pattern.permute.xlu0 0
    %82 = vperm.xlu0 %81, %v44
    %v83 = vpop.permute.xlu0 %82
    %v86 = vlaneseq
    %v87 = vshrl.u32 %v86, 7
    %v88 = vsub.s32 0, %v87
    %v89 = vrot.slane %v36, %v88
    %v90 = vlaneseq
    %v91 = vshrl.u32 %v90, 7
    %v92 = vsub.s32 1, %v91
    %v93 = vrot.slane %v36, %v92
    %v96 = vmul.f32 %v48, %v89
    %v97 = vmul.f32 %v48, %v93
    %v98 = vmul.f32 %v53, %v89
    %v99 = vmul.f32 %v53, %v93
    %v100 = vmul.f32 %v58, %v89
    %v101 = vmul.f32 %v58, %v93
    %v102 = vmul.f32 %v63, %v89
    %v103 = vmul.f32 %v63, %v93
    %v104 = vmul.f32 %v68, %v89
    %v105 = vmul.f32 %v68, %v93
    %v106 = vmul.f32 %v73, %v89
    %v107 = vmul.f32 %v73, %v93
    %v108 = vmul.f32 %v78, %v89
    %v109 = vmul.f32 %v78, %v93
    %v110 = vmul.f32 %v83, %v89
    %v111 = vmul.f32 %v83, %v93
    %v112 = vld [vmem:[%s2] sm:$0xff]
    %v113 = vld [vmem:[%s2 + $0x8] sm:$0xff]
    %v114 = vld [vmem:[%s2 + $0x10] sm:$0xff]
    %v115 = vld [vmem:[%s2 + $0x18] sm:$0xff]
    %v116 = vld [vmem:[%s2 + $0x20] sm:$0xff]
    %v117 = vld [vmem:[%s2 + $0x28] sm:$0xff]
    %v118 = vld [vmem:[%s2 + $0x30] sm:$0xff]
    %v119 = vld [vmem:[%s2 + $0x38] sm:$0xff]
    %121 = vset.pattern.permute.xlu0 0
    %122 = vperm.xlu0 %121, %v112
    %v123 = vpop.permute.xlu0 %122
    %126 = vset.pattern.permute.xlu0 0
    %127 = vperm.xlu0 %126, %v113
    %v128 = vpop.permute.xlu0 %127
    %131 = vset.pattern.permute.xlu0 0
    %132 = vperm.xlu0 %131, %v114
    %v133 = vpop.permute.xlu0 %132
    %136 = vset.pattern.permute.xlu0 0
    %137 = vperm.xlu0 %136, %v115
    %v138 = vpop.permute.xlu0 %137
    %141 = vset.pattern.permute.xlu0 0
    %142 = vperm.xlu0 %141, %v116
    %v143 = vpop.permute.xlu0 %142
    %146 = vset.pattern.permute.xlu0 0
    %147 = vperm.xlu0 %146, %v117
    %v148 = vpop.permute.xlu0 %147
    %151 = vset.pattern.permute.xlu0 0
    %152 = vperm.xlu0 %151, %v118
    %v153 = vpop.permute.xlu0 %152
    %156 = vset.pattern.permute.xlu0 0
    %157 = vperm.xlu0 %156, %v119
    %v158 = vpop.permute.xlu0 %157
    %v160 = vadd.f32 %v96, %v123
    %v161 = vadd.f32 %v97, %v123
    %v162 = vadd.f32 %v98, %v128
    %v163 = vadd.f32 %v99, %v128
    %v164 = vadd.f32 %v100, %v133
    %v165 = vadd.f32 %v101, %v133
    %v166 = vadd.f32 %v102, %v138
    %v167 = vadd.f32 %v103, %v138
    %v168 = vadd.f32 %v104, %v143
    %v169 = vadd.f32 %v105, %v143
    %v170 = vadd.f32 %v106, %v148
    %v171 = vadd.f32 %v107, %v148
    %v172 = vadd.f32 %v108, %v153
    %v173 = vadd.f32 %v109, %v153
    %v174 = vadd.f32 %v110, %v158
    %v175 = vadd.f32 %v111, %v158
    %v176 = vtanh.pop %v160
    %v177 = vtanh.pop %v161
    %v178 = vtanh.pop %v162
    %v179 = vtanh.pop %v163
    %v180 = vtanh.pop %v164
    %v181 = vtanh.pop %v165
    %v182 = vtanh.pop %v166
    %v183 = vtanh.pop %v167
    %v184 = vtanh.pop %v168
    %v185 = vtanh.pop %v169
    %v186 = vtanh.pop %v170
    %v187 = vtanh.pop %v171
    %v188 = vtanh.pop %v172
    %v189 = vtanh.pop %v173
    %v190 = vtanh.pop %v174
    %v191 = vtanh.pop %v175
    %v192 = vld [vmem:[%s3] sm:$0xf]
    %v193 = vld [vmem:[%s3 + $0x4] sm:$0xf]
    %v194 = vld [vmem:[%s3 + $0x8] sm:$0xf]
    %v195 = vld [vmem:[%s3 + $0xc] sm:$0xf]
    %v196 = vld [vmem:[%s3 + $0x10] sm:$0xf]
    %v197 = vld [vmem:[%s3 + $0x14] sm:$0xf]
    %v198 = vld [vmem:[%s3 + $0x18] sm:$0xf]
    %v199 = vld [vmem:[%s3 + $0x1c] sm:$0xf]
    %v200 = vpack.c.bf16 %v178, %v176
    %v201 = vpack.c.bf16 %v179, %v177
    %v202 = vpack.c.bf16 %v182, %v180
    %v203 = vpack.c.bf16 %v183, %v181
    %v204 = vpack.c.bf16 %v186, %v184
    %v205 = vpack.c.bf16 %v187, %v185
    %v206 = vpack.c.bf16 %v190, %v188
    %v207 = vpack.c.bf16 %v191, %v189
    %v208 = vld [vmem:[%s4] sm:$0xff]
    %v209 = vld [vmem:[%s4 + $0x8] sm:$0xff]
    %v210 = vld [vmem:[%s4 + $0x10] sm:$0xff]
    %v211 = vld [vmem:[%s4 + $0x18] sm:$0xff]
    %v212 = vld [vmem:[%s4 + $0x20] sm:$0xff]
    %v213 = vld [vmem:[%s4 + $0x28] sm:$0xff]
    %v214 = vld [vmem:[%s4 + $0x30] sm:$0xff]
    %v215 = vld [vmem:[%s4 + $0x38] sm:$0xff]
    %217 = vset.pattern.permute.xlu0 0
    %218 = vperm.xlu0 %217, %v208
    %v219 = vpop.permute.xlu0 %218
    %222 = vset.pattern.permute.xlu0 0
    %223 = vperm.xlu0 %222, %v209
    %v224 = vpop.permute.xlu0 %223
    %227 = vset.pattern.permute.xlu0 0
    %228 = vperm.xlu0 %227, %v210
    %v229 = vpop.permute.xlu0 %228
    %232 = vset.pattern.permute.xlu0 0
    %233 = vperm.xlu0 %232, %v211
    %v234 = vpop.permute.xlu0 %233
    %237 = vset.pattern.permute.xlu0 0
    %238 = vperm.xlu0 %237, %v212
    %v239 = vpop.permute.xlu0 %238
    %242 = vset.pattern.permute.xlu0 0
    %243 = vperm.xlu0 %242, %v213
    %v244 = vpop.permute.xlu0 %243
    %247 = vset.pattern.permute.xlu0 0
    %248 = vperm.xlu0 %247, %v214
    %v249 = vpop.permute.xlu0 %248
    %252 = vset.pattern.permute.xlu0 0
    %253 = vperm.xlu0 %252, %v215
    %v254 = vpop.permute.xlu0 %253
    %v264 = vunpack.c.l.b16 %v192
    %v265 = vunpack.c.l.b16 %v193
    %v266 = vunpack.c.l.b16 %v194
    %v267 = vunpack.c.l.b16 %v195
    %v268 = vunpack.c.l.b16 %v196
    %v269 = vunpack.c.l.b16 %v197
    %v270 = vunpack.c.l.b16 %v198
    %v271 = vunpack.c.l.b16 %v199
    %v272 = vpack.c.b16 %v265, %v264
    %v273 = vpack.c.b16 %v267, %v266
    %v274 = vpack.c.b16 %v269, %v268
    %v275 = vpack.c.b16 %v271, %v270
    %vm276 = vcmask 523264
    %v278 = vsel %vm276, %v272, 0
    %v281 = vsel %vm276, %v273, 0
    %v284 = vsel %vm276, %v274, 0
    %v287 = vsel %vm276, %v275, 0
    %289 = vmatprep.subr.bf16.mxu0 %v201
    %290 = vmatpush1.bf16.msra.mxu0 %v200
    %291 = vmatprep.subr.bf16.mxu0 %v203
    %292 = vmatpush1.bf16.msra.mxu0 %v202
    %293 = vmatprep.subr.bf16.mxu0 %v205
    %294 = vmatpush1.bf16.msra.mxu0 %v204
    %295 = vmatprep.subr.bf16.mxu0 %v207
    %296 = vmatpush1.bf16.msra.mxu0 %v206
    %297 = vmatprep.subr.bf16.mxu0 0
    %298 = vmatpush1.bf16.msra.mxu0 0
    %299 = vmatprep.subr.bf16.mxu0 0
    %300 = vmatpush1.bf16.msra.mxu0 0
    %301 = vmatprep.subr.bf16.mxu0 0
    %302 = vmatpush1.bf16.msra.mxu0 0
    %303 = vmatprep.subr.bf16.mxu0 0
    %304 = vmatpush1.bf16.msra.mxu0 0
    %305 = vmatprep.subr.bf16.mxu0 0
    %306 = vmatpush1.bf16.msra.mxu0 0
    %307 = vmatprep.subr.bf16.mxu0 0
    %308 = vmatpush1.bf16.msra.mxu0 0
    %309 = vmatprep.subr.bf16.mxu0 0
    %310 = vmatpush1.bf16.msra.mxu0 0
    %311 = vmatprep.subr.bf16.mxu0 0
    %312 = vmatpush1.bf16.msra.mxu0 0
    %313 = vmatprep.subr.bf16.mxu0 0
    %314 = vmatpush1.bf16.msra.mxu0 0
    %315 = vmatprep.subr.bf16.mxu0 0
    %316 = vmatpush1.bf16.msra.mxu0 0
    %317 = vmatprep.subr.bf16.mxu0 0
    %318 = vmatpush1.bf16.msra.mxu0 0
    %319 = vmatprep.subr.bf16.mxu0 0
    %320 = vmatpush1.bf16.msra.mxu0 0
    %321 = vmatprep.mubr.bf16.mxu0 0
    %322 = vmatmul.mubr.bf16.gmra.mrb[0].mxu0 %v278
    %v323 = vpop.f32.mrb[0].mxu0
    %v324 = vadd.f32 %v219, %v323
    %v325 = vpop.f32.mrb[0].mxu0
    %v326 = vadd.f32 %v219, %v325
    %v327 = vpop.f32.mrb[0].mxu0
    %v328 = vadd.f32 %v224, %v327
    %v329 = vpop.f32.mrb[0].mxu0
    %v330 = vadd.f32 %v224, %v329
    %331 = vmatprep.mubr.bf16.mxu0 0
    %332 = vmatmul.mubr.bf16.gmra.mrb[0].mxu0 %v281
    %v333 = vpop.f32.mrb[0].mxu0
    %v334 = vadd.f32 %v229, %v333
    %v335 = vpop.f32.mrb[0].mxu0
    %v336 = vadd.f32 %v229, %v335
    %v337 = vpop.f32.mrb[0].mxu0
    %v338 = vadd.f32 %v234, %v337
    %v339 = vpop.f32.mrb[0].mxu0
    %v340 = vadd.f32 %v234, %v339
    %341 = vmatprep.mubr.bf16.mxu0 0
    %342 = vmatmul.mubr.bf16.gmra.mrb[0].mxu0 %v284
    %v343 = vpop.f32.mrb[0].mxu0
    %v344 = vadd.f32 %v239, %v343
    %v345 = vpop.f32.mrb[0].mxu0
    %v346 = vadd.f32 %v239, %v345
    %v347 = vpop.f32.mrb[0].mxu0
    %v348 = vadd.f32 %v244, %v347
    %v349 = vpop.f32.mrb[0].mxu0
    %v350 = vadd.f32 %v244, %v349
    %351 = vmatprep.mubr.bf16.mxu0 0
    %352 = vmatmul.mubr.bf16.gmra.mrb[0].mxu0 %v287
    %v353 = vpop.f32.mrb[0].mxu0
    %v354 = vadd.f32 %v249, %v353
    %v355 = vpop.f32.mrb[0].mxu0
    %v356 = vadd.f32 %v249, %v355
    %v357 = vpop.f32.mrb[0].mxu0
    %v358 = vadd.f32 %v254, %v357
    %v359 = vpop.f32.mrb[0].mxu0
    %v360 = vadd.f32 %v254, %v359
    %361 = vdwg.mxu0
    %v362 = vtanh.pop %v324
    %v363 = vtanh.pop %v326
    %v364 = vtanh.pop %v328
    %v365 = vtanh.pop %v330
    %v366 = vtanh.pop %v334
    %v367 = vtanh.pop %v336
    %v368 = vtanh.pop %v338
    %v369 = vtanh.pop %v340
    %v370 = vtanh.pop %v344
    %v371 = vtanh.pop %v346
    %v372 = vtanh.pop %v348
    %v373 = vtanh.pop %v350
    %v374 = vtanh.pop %v354
    %v375 = vtanh.pop %v356
    %v376 = vtanh.pop %v358
    %v377 = vtanh.pop %v360
    %v378 = vld [vmem:[%s5] sm:$0xf]
    %v379 = vld [vmem:[%s5 + $0x4] sm:$0xf]
    %v380 = vld [vmem:[%s5 + $0x8] sm:$0xf]
    %v381 = vld [vmem:[%s5 + $0xc] sm:$0xf]
    %v382 = vld [vmem:[%s5 + $0x10] sm:$0xf]
    %v383 = vld [vmem:[%s5 + $0x14] sm:$0xf]
    %v384 = vld [vmem:[%s5 + $0x18] sm:$0xf]
    %v385 = vld [vmem:[%s5 + $0x1c] sm:$0xf]
    %v386 = vpack.c.bf16 %v364, %v362
    %v387 = vpack.c.bf16 %v365, %v363
    %v388 = vpack.c.bf16 %v368, %v366
    %v389 = vpack.c.bf16 %v369, %v367
    %v390 = vpack.c.bf16 %v372, %v370
    %v391 = vpack.c.bf16 %v373, %v371
    %v392 = vpack.c.bf16 %v376, %v374
    %v393 = vpack.c.bf16 %v377, %v375
    %v394 = vld [vmem:[%s6] sm:$0xff]
    %v395 = vld [vmem:[%s6 + $0x8] sm:$0xff]
    %v396 = vld [vmem:[%s6 + $0x10] sm:$0xff]
    %v397 = vld [vmem:[%s6 + $0x18] sm:$0xff]
    %v398 = vld [vmem:[%s6 + $0x20] sm:$0xff]
    %v399 = vld [vmem:[%s6 + $0x28] sm:$0xff]
    %v400 = vld [vmem:[%s6 + $0x30] sm:$0xff]
    %v401 = vld [vmem:[%s6 + $0x38] sm:$0xff]
    %403 = vset.pattern.permute.xlu0 0
    %404 = vperm.xlu0 %403, %v394
    %v405 = vpop.permute.xlu0 %404
    %408 = vset.pattern.permute.xlu0 0
    %409 = vperm.xlu0 %408, %v395
    %v410 = vpop.permute.xlu0 %409
    %413 = vset.pattern.permute.xlu0 0
    %414 = vperm.xlu0 %413, %v396
    %v415 = vpop.permute.xlu0 %414
    %418 = vset.pattern.permute.xlu0 0
    %419 = vperm.xlu0 %418, %v397
    %v420 = vpop.permute.xlu0 %419
    %423 = vset.pattern.permute.xlu0 0
    %424 = vperm.xlu0 %423, %v398
    %v425 = vpop.permute.xlu0 %424
    %428 = vset.pattern.permute.xlu0 0
    %429 = vperm.xlu0 %428, %v399
    %v430 = vpop.permute.xlu0 %429
    %433 = vset.pattern.permute.xlu0 0
    %434 = vperm.xlu0 %433, %v400
    %v435 = vpop.permute.xlu0 %434
    %438 = vset.pattern.permute.xlu0 0
    %439 = vperm.xlu0 %438, %v401
    %v440 = vpop.permute.xlu0 %439
    %v450 = vunpack.c.l.b16 %v378
    %v451 = vunpack.c.l.b16 %v379
    %v452 = vunpack.c.l.b16 %v380
    %v453 = vunpack.c.l.b16 %v381
    %v454 = vunpack.c.l.b16 %v382
    %v455 = vunpack.c.l.b16 %v383
    %v456 = vunpack.c.l.b16 %v384
    %v457 = vunpack.c.l.b16 %v385
    %v458 = vpack.c.b16 %v451, %v450
    %v459 = vpack.c.b16 %v453, %v452
    %v460 = vpack.c.b16 %v455, %v454
    %v461 = vpack.c.b16 %v457, %v456
    %v463 = vsel %vm276, %v458, 0
    %v466 = vsel %vm276, %v459, 0
    %v469 = vsel %vm276, %v460, 0
    %v472 = vsel %vm276, %v461, 0
    %474 = vmatprep.subr.bf16.mxu0 %v387
    %475 = vmatpush1.bf16.msra.mxu0 %v386
    %476 = vmatprep.subr.bf16.mxu0 %v389
    %477 = vmatpush1.bf16.msra.mxu0 %v388
    %478 = vmatprep.subr.bf16.mxu0 %v391
    %479 = vmatpush1.bf16.msra.mxu0 %v390
    %480 = vmatprep.subr.bf16.mxu0 %v393
    %481 = vmatpush1.bf16.msra.mxu0 %v392
    %482 = vmatprep.subr.bf16.mxu0 0
    %483 = vmatpush1.bf16.msra.mxu0 0
    %484 = vmatprep.subr.bf16.mxu0 0
    %485 = vmatpush1.bf16.msra.mxu0 0
    %486 = vmatprep.subr.bf16.mxu0 0
    %487 = vmatpush1.bf16.msra.mxu0 0
    %488 = vmatprep.subr.bf16.mxu0 0
    %489 = vmatpush1.bf16.msra.mxu0 0
    %490 = vmatprep.subr.bf16.mxu0 0
    %491 = vmatpush1.bf16.msra.mxu0 0
    %492 = vmatprep.subr.bf16.mxu0 0
    %493 = vmatpush1.bf16.msra.mxu0 0
    %494 = vmatprep.subr.bf16.mxu0 0
    %495 = vmatpush1.bf16.msra.mxu0 0
    %496 = vmatprep.subr.bf16.mxu0 0
    %497 = vmatpush1.bf16.msra.mxu0 0
    %498 = vmatprep.subr.bf16.mxu0 0
    %499 = vmatpush1.bf16.msra.mxu0 0
    %500 = vmatprep.subr.bf16.mxu0 0
    %501 = vmatpush1.bf16.msra.mxu0 0
    %502 = vmatprep.subr.bf16.mxu0 0
    %503 = vmatpush1.bf16.msra.mxu0 0
    %504 = vmatprep.subr.bf16.mxu0 0
    %505 = vmatpush1.bf16.msra.mxu0 0
    %506 = vmatprep.mubr.bf16.mxu0 0
    %507 = vmatmul.mubr.bf16.gmra.mrb[0].mxu0 %v463
    %v508 = vpop.f32.mrb[0].mxu0
    %v509 = vadd.f32 %v405, %v508
    %v510 = vpop.f32.mrb[0].mxu0
    %v511 = vadd.f32 %v405, %v510
    %v512 = vpop.f32.mrb[0].mxu0
    %v513 = vadd.f32 %v410, %v512
    %v514 = vpop.f32.mrb[0].mxu0
    %v515 = vadd.f32 %v410, %v514
    %516 = vmatprep.mubr.bf16.mxu0 0
    %517 = vmatmul.mubr.bf16.gmra.mrb[0].mxu0 %v466
    %v518 = vpop.f32.mrb[0].mxu0
    %v519 = vadd.f32 %v415, %v518
    %v520 = vpop.f32.mrb[0].mxu0
    %v521 = vadd.f32 %v415, %v520
    %v522 = vpop.f32.mrb[0].mxu0
    %v523 = vadd.f32 %v420, %v522
    %v524 = vpop.f32.mrb[0].mxu0
    %v525 = vadd.f32 %v420, %v524
    %526 = vmatprep.mubr.bf16.mxu0 0
    %527 = vmatmul.mubr.bf16.gmra.mrb[0].mxu0 %v469
    %v528 = vpop.f32.mrb[0].mxu0
    %v529 = vadd.f32 %v425, %v528
    %v530 = vpop.f32.mrb[0].mxu0
    %v531 = vadd.f32 %v425, %v530
    %v532 = vpop.f32.mrb[0].mxu0
    %v533 = vadd.f32 %v430, %v532
    %v534 = vpop.f32.mrb[0].mxu0
    %v535 = vadd.f32 %v430, %v534
    %536 = vmatprep.mubr.bf16.mxu0 0
    %537 = vmatmul.mubr.bf16.gmra.mrb[0].mxu0 %v472
    %v538 = vpop.f32.mrb[0].mxu0
    %v539 = vadd.f32 %v435, %v538
    %v540 = vpop.f32.mrb[0].mxu0
    %v541 = vadd.f32 %v435, %v540
    %v542 = vpop.f32.mrb[0].mxu0
    %v543 = vadd.f32 %v440, %v542
    %v544 = vpop.f32.mrb[0].mxu0
    %v545 = vadd.f32 %v440, %v544
    %546 = vdwg.mxu0
    %v547 = vtanh.pop %v509
    %v548 = vtanh.pop %v511
    %v549 = vtanh.pop %v513
    %v550 = vtanh.pop %v515
    %v551 = vtanh.pop %v519
    %v552 = vtanh.pop %v521
    %v553 = vtanh.pop %v523
    %v554 = vtanh.pop %v525
    %v555 = vtanh.pop %v529
    %v556 = vtanh.pop %v531
    %v557 = vtanh.pop %v533
    %v558 = vtanh.pop %v535
    %v559 = vtanh.pop %v539
    %v560 = vtanh.pop %v541
    %v561 = vtanh.pop %v543
    %v562 = vtanh.pop %v545
    %v563 = vld [vmem:[%s7] sm:$0x1]
    %v564 = vpack.c.bf16 %v549, %v547
    %v565 = vpack.c.bf16 %v550, %v548
    %v566 = vpack.c.bf16 %v553, %v551
    %v567 = vpack.c.bf16 %v554, %v552
    %v568 = vpack.c.bf16 %v557, %v555
    %v569 = vpack.c.bf16 %v558, %v556
    %v570 = vpack.c.bf16 %v561, %v559
    %v571 = vpack.c.bf16 %v562, %v560
    %v572 = vld [vmem:[#allocation2] sm:$0x1]
    %574 = vset.pattern.permute.xlu0 0
    %575 = vperm.xlu0 %574, %v572
    %v576 = vpop.permute.xlu0 %575
    %v578 = vlaneseq
    %v579 = vshrl.u32 %v578, 7
    %v580 = vsub.s32 0, %v579
    %v581 = vrot.slane %v576, %v580
    %v583 = vsel %vm276, %v563, 0
    %585 = vmatprep.subr.bf16.mxu0 %v565
    %586 = vmatpush1.bf16.msra.mxu0 %v564
    %587 = vmatprep.subr.bf16.mxu0 %v567
    %588 = vmatpush1.bf16.msra.mxu0 %v566
    %589 = vmatprep.subr.bf16.mxu0 %v569
    %590 = vmatpush1.bf16.msra.mxu0 %v568
    %591 = vmatprep.subr.bf16.mxu0 %v571
    %592 = vmatpush1.bf16.msra.mxu0 %v570
    %593 = vmatprep.subr.bf16.mxu0 0
    %594 = vmatpush1.bf16.msra.mxu0 0
    %595 = vmatprep.subr.bf16.mxu0 0
    %596 = vmatpush1.bf16.msra.mxu0 0
    %597 = vmatprep.subr.bf16.mxu0 0
    %598 = vmatpush1.bf16.msra.mxu0 0
    %599 = vmatprep.subr.bf16.mxu0 0
    %600 = vmatpush1.bf16.msra.mxu0 0
    %601 = vmatprep.subr.bf16.mxu0 0
    %602 = vmatpush1.bf16.msra.mxu0 0
    %603 = vmatprep.subr.bf16.mxu0 0
    %604 = vmatpush1.bf16.msra.mxu0 0
    %605 = vmatprep.subr.bf16.mxu0 0
    %606 = vmatpush1.bf16.msra.mxu0 0
    %607 = vmatprep.subr.bf16.mxu0 0
    %608 = vmatpush1.bf16.msra.mxu0 0
    %609 = vmatprep.subr.bf16.mxu0 0
    %610 = vmatpush1.bf16.msra.mxu0 0
    %611 = vmatprep.subr.bf16.mxu0 0
    %612 = vmatpush1.bf16.msra.mxu0 0
    %613 = vmatprep.subr.bf16.mxu0 0
    %614 = vmatpush1.bf16.msra.mxu0 0
    %615 = vmatprep.subr.bf16.mxu0 0
    %616 = vmatpush1.bf16.msra.mxu0 0
    %617 = vmatprep.mubr.bf16.mxu0 0
    %618 = vmatmul.mubr.bf16.gmra.mrb[0].mxu0 %v583
    %v619 = vpop.f32.mrb[0].mxu0
    %v620 = vadd.f32 %v581, %v619
    %v621 = vpop.f32.mrb[0].mxu0
    %v622 = vadd.f32 %v581, %v621
    %v623 = vpop.f32.mrb[0].mxu0
    %v624 = vpop.f32.mrb[0].mxu0
    %625 = vdwg.mxu0
    %v628 = vcombine.low %v620, %v622
    %v630 = vunpack.c.l.s4 1966171168
    %v631 = vunpack.c.0.s8 %v630
    %v632 = vlaneseq
    %v633 = vshrl.u32 %v632, 7
    %v634 = vsub.s32 %v631, %v633
    %v635 = vrot.slane %v628, %v634
    %v637 = vunpack.c.l.s4 1966171168
    %v638 = vunpack.c.0.s8 %v637
    %v639 = vlaneseq
    %v640 = vshrl.u32 %v639, 7
    %v641 = vsub.s32 %v638, %v640
    %v642 = vrot.slane %v635, %v641
    %v644 = vlaneseq
    %vm645 = vcmp.ge.s32.totalorder %v644, 0
    %vm646 = vcmp.lt.s32.totalorder %v644, 256
    %vm647 = vmand %vm645, %vm646
    %648 = vst.msk [vmem:[#allocation3] sm:$0x3] %vm647, %v642
    // Predicated region
    $region38: #{tpu_custom_call.1} parent=1 // pred_check
      _
    $region39: #{tpu_custom_call.1} parent=1 // pred_check_branch
      %650 = sbr.rel (0) target = $region41
    $region40: #{tpu_custom_call.1} parent=1 // pred_region
      %s652 = ssub.s32 32, 32
      %653 = vsyncadd [#allocation4], %s652
      %s655 = sshll.u32 [#allocation3], 4
      %s656 = int_to_ptr.vmem [resolvable:$true] %s655
      %658 = dma.vmem_to_hbm [thread:$0]  %s656, 32, %s9, [#allocation4]
    $region41: #{tpu_custom_call.1} parent=1 // pred_fallthru
      _
    // Predicated region
    $region42: #{tpu_custom_call.1} parent=1 // pred_check
      _
    $region43: #{tpu_custom_call.1} parent=1 // pred_check_branch
      %660 = sbr.rel (0) target = $region45
    $region44: #{tpu_custom_call.1} parent=1 // pred_region
      %661 = dma.done [#allocation4], 32
    $region45: #{tpu_custom_call.1} parent=1 // pred_fallthru
      _
    %662 = vsyncpa [#allocation4], 1

</llo_original>
